<compile_context>
chip_gen: v6e
topology: v6e:2x2x1
jax: 0.10.0
libtpu: 0.0.40
codegen_flags: <defaults>
</compile_context>

<pallas_src>
import jax
import jax.numpy as jnp
from jax.experimental import pallas as pl
from jax.experimental.pallas import tpu as pltpu


def _scale_mul_kernel(x_ref, s_ref, o_ref):
    # x_ref: (tile_r, NC), s_ref: (1, NC) -> sublane broadcast, VPU multiply.
    o_ref[...] = x_ref[...] * s_ref[...]


def _round_up(x, m):
    return ((x + m - 1) // m) * m


def _sublane_pack(dtype):
    # f32 -> 8, bf16 -> 16, int8/fp8 -> 32 (sublane packing of the vreg)
    itemsize = jnp.dtype(dtype).itemsize
    return max(8, 32 // itemsize)


def _vmem_budget_bytes():
    # ~25% of the chip's VMEM (128 MiB v5e/v6e -> 32 MiB, 64 MiB v7x -> 16 MiB).
    try:
        cap = int(pltpu.get_tpu_info().vmem_capacity_bytes)
    except Exception:
        cap = 64 * 1024 * 1024  # conservative (v7x) fallback
    return cap // 4


# Split into >=2 grid steps above this payload so the "parallel" grid axis can
# shard across multiple TensorCores (v7x); below it, launch/step overhead wins.
_MULTI_CORE_SPLIT_BYTES = 4 * 1024 * 1024


def _pick_tile_rows(rows, cols, dtype, budget):
    """Row-tile size for the lane-dense (rows, cols) view.

    Returns `rows` for the single-block (grid=()) fast path, otherwise a
    row-tile that keeps double-buffered x/out blocks plus the resident scale
    row inside the VMEM budget.
    """
    item = jnp.dtype(dtype).itemsize
    pack = _sublane_pack(dtype)
    cols_pad = _round_up(cols, 128)
    row_bytes = cols_pad * item                       # one padded VMEM row
    scale_bytes = pack * cols_pad * item              # padded (1, cols) block

    payload = 2 * rows * cols * item                  # x + out HBM bytes
    single_block_bytes = 2 * _round_up(rows, pack) * row_bytes + scale_bytes

    if single_block_bytes <= budget and payload < _MULTI_CORE_SPLIT_BYTES:
        return rows                                   # grid=() fast path

    # Tiled path: x and out blocks are double-buffered; the scale row has a
    # constant index_map but still gets its buffers -> count everything.
    avail = budget - 2 * scale_bytes
    max_rows = max(pack, (avail // (4 * row_bytes)) // pack * pack)
    if payload >= _MULTI_CORE_SPLIT_BYTES:
        # Force at least 2 grid steps so ("parallel",) can use both v7x TCs.
        max_rows = min(max_rows, max(pack, _round_up(pl.cdiv(rows, 2), pack)))

    start = max(pack, (min(max_rows, rows) // pack) * pack)
    for cand in range(start, pack - 1, -pack):        # prefer an exact divisor
        if rows % cand == 0:
            return cand
    return min(max_rows, rows)                        # ragged tail handled by Pallas


def channel_scale_mul(x, scale):
    """x: (N, C, H, W), scale: (N, C, 1, 1) -> x * scale (broadcast over H, W)."""
    N, C, H, W = x.shape
    assert scale.shape == (N, C, 1, 1)
    NC, HW = N * C, H * W

    # Lane-dense view: channels on lanes, spatial on sublanes.
    x2d = x.reshape(NC, HW).T                          # (HW, NC)
    s_row = scale.reshape(1, NC).astype(x.dtype)       # (1, NC) lane-dense row

    budget = _vmem_budget_bytes()
    tile_r = _pick_tile_rows(HW, NC, x.dtype, budget)

    if tile_r >= HW:
        # Single block: no grid, no BlockSpec index math, no pipeline buffers.
        out2d = pl.pallas_call(
            _scale_mul_kernel,
            out_shape=jax.ShapeDtypeStruct((HW, NC), x.dtype),
            compiler_params=pltpu.CompilerParams(vmem_limit_bytes=int(budget)),
        )(x2d, s_row)
    else:
        grid = (pl.cdiv(HW, tile_r),)
        out2d = pl.pallas_call(
            _scale_mul_kernel,
            out_shape=jax.ShapeDtypeStruct((HW, NC), x.dtype),
            grid_spec=pltpu.PrefetchScalarGridSpec(
                num_scalar_prefetch=0,
                grid=grid,
                in_specs=[
                    # x: row (spatial) tiles, lane axis kept full (lane-dense)
                    pl.BlockSpec((tile_r, NC), lambda i: (i, 0)),
                    # scale: one resident lane-dense row, same for every step
                    pl.BlockSpec((1, NC), lambda i: (0, 0)),
                ],
                out_specs=pl.BlockSpec((tile_r, NC), lambda i: (i, 0)),
            ),
            compiler_params=pltpu.CompilerParams(
                dimension_semantics=("parallel",),
                vmem_limit_bytes=int(budget),
            ),
        )(x2d, s_row)

    return out2d.T.reshape(N, C, H, W)


if __name__ == "__main__":
    key = jax.random.PRNGKey(0)
    k1, k2 = jax.random.split(key)

    # Shapes from the PyTorch module: x329 [1,1392,7,7], x334 [1,1392,1,1]
    x329 = jax.random.normal(k1, (1, 1392, 7, 7), dtype=jnp.float32)
    x334 = jax.random.normal(k2, (1, 1392, 1, 1), dtype=jnp.float32)

    out = channel_scale_mul(x329, x334)
    out = jax.block_until_ready(out)

    # Correctness check against plain JAX broadcast multiply
    ref = x329 * x334
    assert out.shape == (1, 1392, 7, 7)
    assert jnp.allclose(out, ref, atol=1e-6, rtol=1e-6)

    print("KERNEL_OK")
</pallas_src>

<mosaic_0001>
module attributes {stable_mosaic.version = 11 : i64} {
  func.func @_scale_mul_kernel(%arg0: memref<49x1392xf32, #tpu.memory_space<vmem>>, %arg1: memref<1x1392xf32, #tpu.memory_space<vmem>>, %arg2: memref<49x1392xf32, #tpu.memory_space<vmem>>) attributes {dimension_semantics = [], scalar_prefetch = 0 : i64, scratch_operands = 0 : i64, tpu.core_type = #tpu.core_type<tc>} {
    %c0 = arith.constant 0 : index
    %c0_0 = arith.constant 0 : index
    %0 = vector.load %arg0[%c0, %c0_0] : memref<49x1392xf32, #tpu.memory_space<vmem>>, vector<49x1392xf32>
    %c0_1 = arith.constant 0 : index
    %c0_2 = arith.constant 0 : index
    %1 = vector.load %arg1[%c0_1, %c0_2] : memref<1x1392xf32, #tpu.memory_space<vmem>>, vector<1x1392xf32>
    %2 = vector.broadcast %1 : vector<1x1392xf32> to vector<49x1392xf32>
    %3 = arith.mulf %0, %2 : vector<49x1392xf32>
    %c0_3 = arith.constant 0 : index
    %c0_4 = arith.constant 0 : index
    %4 = vector.load %arg2[%c0_3, %c0_4] : memref<49x1392xf32, #tpu.memory_space<vmem>>, vector<49x1392xf32>
    tpu.vector_store %arg2[%c0_3, %c0_4], %3 {strides = array<i32>} : memref<49x1392xf32, #tpu.memory_space<vmem>>, vector<49x1392xf32>,
    return
  }
}

</mosaic_0001>

<llo_original>
// kernel: tpu_custom_call.1
$region0: #{tpu_custom_call.1}
  #allocation0 [shape = 'u32[]', space=smem, size = 0x4, offset = 0x4, fixed_abs, tag = 'smem constant byte address 0x4 - core index']
  #allocation1 [shape = 'u32[144,128]{1,0:T(1,128)}', space=vmem, size = 0x12000, scoped, tag = 'internal scratch']
  %s0 = inlined_call_operand.hbm [shape: f32[49,1392], index: 0, kind: input, shape index: {}]
  %s1 = inlined_call_operand.hbm [shape: f32[1,1392], index: 1, kind: input, shape index: {}]
  %s2 = inlined_call_operand.hbm [shape: f32[49,1392], index: 2, kind: output, shape index: {}]
  %s3 = sld [smem:[#allocation0]]
  $region26: #{tpu_custom_call.1} parent=0
    _
  %s5 = ssub.s32 1, %s3
  %s6 = scalar_select 0, %s5, %s3
  $region1: #{tpu_custom_call.1} parent=0
    #allocation2 [shape = 'u8[315392]{0}', space=vmem, size = 0x4d000, scoped, tag = 'input window, operand 0, single buffered']
    #allocation3 [shape = 's32[1]{0}', space=sflag, size = 0x4, scoped, tag = 'scoped memory for tpu_custom_call.1']
    #allocation4 [shape = 's32[1]{0}', space=sflag, size = 0x4, scoped, tag = 'scoped memory for tpu_custom_call.1']
    #allocation5 [shape = 'u8[5632]{0}', space=vmem, size = 0x1800, scoped, tag = 'input window, operand 1, single buffered']
    #allocation6 [shape = 's32[1]{0}', space=sflag, size = 0x4, scoped, tag = 'scoped memory for tpu_custom_call.1']
    #allocation7 [shape = 'u8[315392]{0}', space=vmem, size = 0x4d000, scoped, tag = 'output window, operand 0, single buffered']
    %7 = vsyncpa [#allocation3], 0
    %8 = vsyncpa [#allocation6], 0
    %9 = vsyncpa [#allocation4], 0
    // Predicated region
    $region2: #{tpu_custom_call.1} parent=1 // pred_check
      _
    $region3: #{tpu_custom_call.1} parent=1 // pred_check_branch
      %11 = sbr.rel (0) target = $region5
    $region4: #{tpu_custom_call.1} parent=1 // pred_region
      %s13 = ssub.s32 9856, 9856
      %14 = vsyncadd [#allocation3], %s13
      %s15 = sshll.u32 [#allocation2], 4
      %s16 = int_to_ptr.vmem [resolvable:$true] %s15
      %21 = dma.hbm_to_vmem [thread:$0]  %s0, 9856, %s16, [#allocation3], 1408, 1408, 88
    $region5: #{tpu_custom_call.1} parent=1 // pred_fallthru
      _
    // Predicated region
    $region6: #{tpu_custom_call.1} parent=1 // pred_check
      _
    $region7: #{tpu_custom_call.1} parent=1 // pred_check_branch
      %23 = sbr.rel (0) target = $region9
    $region8: #{tpu_custom_call.1} parent=1 // pred_region
      %s25 = ssub.s32 176, 176
      %26 = vsyncadd [#allocation6], %s25
      %s28 = sshll.u32 [#allocation5], 4
      %s29 = int_to_ptr.vmem [resolvable:$true] %s28
      %31 = dma.hbm_to_vmem [thread:$0]  %s1, 176, %s29, [#allocation6]
    $region9: #{tpu_custom_call.1} parent=1 // pred_fallthru
      _
    // Predicated region
    $region10: #{tpu_custom_call.1} parent=1 // pred_check
      _
    $region11: #{tpu_custom_call.1} parent=1 // pred_check_branch
      %33 = sbr.rel (0) target = $region13
    $region12: #{tpu_custom_call.1} parent=1 // pred_region
      %34 = dma.done [#allocation3], 9856
    $region13: #{tpu_custom_call.1} parent=1 // pred_fallthru
      _
    // Predicated region
    $region14: #{tpu_custom_call.1} parent=1 // pred_check
      _
    $region15: #{tpu_custom_call.1} parent=1 // pred_check_branch
      %36 = sbr.rel (0) target = $region17
    $region16: #{tpu_custom_call.1} parent=1 // pred_region
      %37 = dma.done [#allocation6], 176
    $region17: #{tpu_custom_call.1} parent=1 // pred_fallthru
      _
    %v38 = vld [vmem:[#allocation2] sm:$0xff]
    %v39 = vld [vmem:[#allocation2 + $0x8] sm:$0xff]
    %v40 = vld [vmem:[#allocation2 + $0x10] sm:$0xff]
    %v41 = vld [vmem:[#allocation2 + $0x18] sm:$0xff]
    %v42 = vld [vmem:[#allocation2 + $0x20] sm:$0xff]
    %v43 = vld [vmem:[#allocation2 + $0x28] sm:$0xff]
    %v44 = vld [vmem:[#allocation2 + $0x30] sm:$0xff]
    %v45 = vld [vmem:[#allocation2 + $0x38] sm:$0xff]
    %v46 = vld [vmem:[#allocation2 + $0x40] sm:$0xff]
    %v47 = vld [vmem:[#allocation2 + $0x48] sm:$0xff]
    %v48 = vld [vmem:[#allocation2 + $0x50] sm:$0xff]
    %v49 = vld [vmem:[#allocation2 + $0x58] sm:$0xff]
    %v50 = vld [vmem:[#allocation2 + $0x60] sm:$0xff]
    %v51 = vld [vmem:[#allocation2 + $0x68] sm:$0xff]
    %v52 = vld [vmem:[#allocation2 + $0x70] sm:$0xff]
    %v53 = vld [vmem:[#allocation2 + $0x78] sm:$0xff]
    %v54 = vld [vmem:[#allocation2 + $0x80] sm:$0xff]
    %v55 = vld [vmem:[#allocation2 + $0x88] sm:$0xff]
    %v56 = vld [vmem:[#allocation2 + $0x90] sm:$0xff]
    %v57 = vld [vmem:[#allocation2 + $0x98] sm:$0xff]
    %v58 = vld [vmem:[#allocation2 + $0xa0] sm:$0xff]
    %v59 = vld [vmem:[#allocation2 + $0xa8] sm:$0xff]
    %v60 = vld [vmem:[#allocation2 + $0xb0] sm:$0xff]
    %v61 = vld [vmem:[#allocation2 + $0xb8] sm:$0xff]
    %v62 = vld [vmem:[#allocation2 + $0xc0] sm:$0xff]
    %v63 = vld [vmem:[#allocation2 + $0xc8] sm:$0xff]
    %v64 = vld [vmem:[#allocation2 + $0xd0] sm:$0xff]
    %v65 = vld [vmem:[#allocation2 + $0xd8] sm:$0xff]
    %v66 = vld [vmem:[#allocation2 + $0xe0] sm:$0xff]
    %v67 = vld [vmem:[#allocation2 + $0xe8] sm:$0xff]
    %v68 = vld [vmem:[#allocation2 + $0xf0] sm:$0xff]
    %v69 = vld [vmem:[#allocation2 + $0xf8] sm:$0xff]
    %v70 = vld [vmem:[#allocation2 + $0x100] sm:$0xff]
    %v71 = vld [vmem:[#allocation2 + $0x108] sm:$0xff]
    %v72 = vld [vmem:[#allocation2 + $0x110] sm:$0xff]
    %v73 = vld [vmem:[#allocation2 + $0x118] sm:$0xff]
    %v74 = vld [vmem:[#allocation2 + $0x120] sm:$0xff]
    %v75 = vld [vmem:[#allocation2 + $0x128] sm:$0xff]
    %v76 = vld [vmem:[#allocation2 + $0x130] sm:$0xff]
    %v77 = vld [vmem:[#allocation2 + $0x138] sm:$0xff]
    %v78 = vld [vmem:[#allocation2 + $0x140] sm:$0xff]
    %v79 = vld [vmem:[#allocation2 + $0x148] sm:$0xff]
    %v80 = vld [vmem:[#allocation2 + $0x150] sm:$0xff]
    %v81 = vld [vmem:[#allocation2 + $0x158] sm:$0xff]
    %v82 = vld [vmem:[#allocation2 + $0x160] sm:$0xff]
    %v83 = vld [vmem:[#allocation2 + $0x168] sm:$0xff]
    %v84 = vld [vmem:[#allocation2 + $0x170] sm:$0xff]
    %v85 = vld [vmem:[#allocation2 + $0x178] sm:$0xff]
    %v86 = vld [vmem:[#allocation2 + $0x180] sm:$0xff]
    %v87 = vld [vmem:[#allocation2 + $0x188] sm:$0xff]
    %v88 = vld [vmem:[#allocation2 + $0x190] sm:$0xff]
    %v89 = vld [vmem:[#allocation2 + $0x198] sm:$0xff]
    %v90 = vld [vmem:[#allocation2 + $0x1a0] sm:$0xff]
    %v91 = vld [vmem:[#allocation2 + $0x1a8] sm:$0xff]
    %v92 = vld [vmem:[#allocation2 + $0x1b0] sm:$0xff]
    %v93 = vld [vmem:[#allocation2 + $0x1b8] sm:$0xff]
    %v94 = vld [vmem:[#allocation2 + $0x1c0] sm:$0xff]
    %v95 = vld [vmem:[#allocation2 + $0x1c8] sm:$0xff]
    %v96 = vld [vmem:[#allocation2 + $0x1d0] sm:$0xff]
    %v97 = vld [vmem:[#allocation2 + $0x1d8] sm:$0xff]
    %v98 = vld [vmem:[#allocation2 + $0x1e0] sm:$0xff]
    %v99 = vld [vmem:[#allocation2 + $0x1e8] sm:$0xff]
    %v100 = vld [vmem:[#allocation2 + $0x1f0] sm:$0xff]
    %v101 = vld [vmem:[#allocation2 + $0x1f8] sm:$0xff]
    %v102 = vld [vmem:[#allocation2 + $0x200] sm:$0xff]
    %v103 = vld [vmem:[#allocation2 + $0x208] sm:$0xff]
    %v104 = vld [vmem:[#allocation2 + $0x210] sm:$0x1]
    %v105 = vld [vmem:[#allocation2 + $0x218] sm:$0x1]
    %v106 = vld [vmem:[#allocation2 + $0x220] sm:$0x1]
    %v107 = vld [vmem:[#allocation2 + $0x228] sm:$0x1]
    %v108 = vld [vmem:[#allocation2 + $0x230] sm:$0x1]
    %v109 = vld [vmem:[#allocation2 + $0x238] sm:$0x1]
    %v110 = vld [vmem:[#allocation2 + $0x240] sm:$0x1]
    %v111 = vld [vmem:[#allocation2 + $0x248] sm:$0x1]
    %v112 = vld [vmem:[#allocation2 + $0x250] sm:$0x1]
    %v113 = vld [vmem:[#allocation2 + $0x258] sm:$0x1]
    %v114 = vld [vmem:[#allocation2 + $0x260] sm:$0x1]
    %v115 = vld [vmem:[#allocation5] sm:$0xff]
    %v116 = vld [vmem:[#allocation5 + $0x8] sm:$0x7]
    %v119 = vlaneseq
    %v120 = vshrl.u32 %v119, 7
    %v121 = vsub.s32 0, %v120
    %v122 = vrot.slane %v115, %v121
    %v123 = vlaneseq
    %v124 = vshrl.u32 %v123, 7
    %v125 = vsub.s32 1, %v124
    %v126 = vrot.slane %v115, %v125
    %v127 = vlaneseq
    %v128 = vshrl.u32 %v127, 7
    %v129 = vsub.s32 2, %v128
    %v130 = vrot.slane %v115, %v129
    %v131 = vlaneseq
    %v132 = vshrl.u32 %v131, 7
    %v133 = vsub.s32 3, %v132
    %v134 = vrot.slane %v115, %v133
    %v135 = vlaneseq
    %v136 = vshrl.u32 %v135, 7
    %v137 = vsub.s32 4, %v136
    %v138 = vrot.slane %v115, %v137
    %v139 = vlaneseq
    %v140 = vshrl.u32 %v139, 7
    %v141 = vsub.s32 5, %v140
    %v142 = vrot.slane %v115, %v141
    %v143 = vlaneseq
    %v144 = vshrl.u32 %v143, 7
    %v145 = vsub.s32 6, %v144
    %v146 = vrot.slane %v115, %v145
    %v147 = vlaneseq
    %v148 = vshrl.u32 %v147, 7
    %v149 = vsub.s32 7, %v148
    %v150 = vrot.slane %v115, %v149
    %v151 = vlaneseq
    %v152 = vshrl.u32 %v151, 7
    %v153 = vsub.s32 0, %v152
    %v154 = vrot.slane %v116, %v153
    %v155 = vlaneseq
    %v156 = vshrl.u32 %v155, 7
    %v157 = vsub.s32 1, %v156
    %v158 = vrot.slane %v116, %v157
    %v159 = vlaneseq
    %v160 = vshrl.u32 %v159, 7
    %v161 = vsub.s32 2, %v160
    %v162 = vrot.slane %v116, %v161
    %v174 = vmul.f32 %v38, %v122
    %v175 = vmul.f32 %v39, %v126
    %v176 = vmul.f32 %v40, %v130
    %v177 = vmul.f32 %v41, %v134
    %v178 = vmul.f32 %v42, %v138
    %v179 = vmul.f32 %v43, %v142
    %v180 = vmul.f32 %v44, %v146
    %v181 = vmul.f32 %v45, %v150
    %v182 = vmul.f32 %v46, %v154
    %v183 = vmul.f32 %v47, %v158
    %v184 = vmul.f32 %v48, %v162
    %v185 = vmul.f32 %v49, %v122
    %v186 = vmul.f32 %v50, %v126
    %v187 = vmul.f32 %v51, %v130
    %v188 = vmul.f32 %v52, %v134
    %v189 = vmul.f32 %v53, %v138
    %v190 = vmul.f32 %v54, %v142
    %v191 = vmul.f32 %v55, %v146
    %v192 = vmul.f32 %v56, %v150
    %v193 = vmul.f32 %v57, %v154
    %v194 = vmul.f32 %v58, %v158
    %v195 = vmul.f32 %v59, %v162
    %v196 = vmul.f32 %v60, %v122
    %v197 = vmul.f32 %v61, %v126
    %v198 = vmul.f32 %v62, %v130
    %v199 = vmul.f32 %v63, %v134
    %v200 = vmul.f32 %v64, %v138
    %v201 = vmul.f32 %v65, %v142
    %v202 = vmul.f32 %v66, %v146
    %v203 = vmul.f32 %v67, %v150
    %v204 = vmul.f32 %v68, %v154
    %v205 = vmul.f32 %v69, %v158
    %v206 = vmul.f32 %v70, %v162
    %v207 = vmul.f32 %v71, %v122
    %v208 = vmul.f32 %v72, %v126
    %v209 = vmul.f32 %v73, %v130
    %v210 = vmul.f32 %v74, %v134
    %v211 = vmul.f32 %v75, %v138
    %v212 = vmul.f32 %v76, %v142
    %v213 = vmul.f32 %v77, %v146
    %v214 = vmul.f32 %v78, %v150
    %v215 = vmul.f32 %v79, %v154
    %v216 = vmul.f32 %v80, %v158
    %v217 = vmul.f32 %v81, %v162
    %v218 = vmul.f32 %v82, %v122
    %v219 = vmul.f32 %v83, %v126
    %v220 = vmul.f32 %v84, %v130
    %v221 = vmul.f32 %v85, %v134
    %v222 = vmul.f32 %v86, %v138
    %v223 = vmul.f32 %v87, %v142
    %v224 = vmul.f32 %v88, %v146
    %v225 = vmul.f32 %v89, %v150
    %v226 = vmul.f32 %v90, %v154
    %v227 = vmul.f32 %v91, %v158
    %v228 = vmul.f32 %v92, %v162
    %v229 = vmul.f32 %v93, %v122
    %v230 = vmul.f32 %v94, %v126
    %v231 = vmul.f32 %v95, %v130
    %v232 = vmul.f32 %v96, %v134
    %v233 = vmul.f32 %v97, %v138
    %v234 = vmul.f32 %v98, %v142
    %v235 = vmul.f32 %v99, %v146
    %v236 = vmul.f32 %v100, %v150
    %v237 = vmul.f32 %v101, %v154
    %v238 = vmul.f32 %v102, %v158
    %v239 = vmul.f32 %v103, %v162
    %v240 = vmul.f32 %v104, %v122
    %v241 = vmul.f32 %v105, %v126
    %v242 = vmul.f32 %v106, %v130
    %v243 = vmul.f32 %v107, %v134
    %v244 = vmul.f32 %v108, %v138
    %v245 = vmul.f32 %v109, %v142
    %v246 = vmul.f32 %v110, %v146
    %v247 = vmul.f32 %v111, %v150
    %v248 = vmul.f32 %v112, %v154
    %v249 = vmul.f32 %v113, %v158
    %v250 = vmul.f32 %v114, %v162
    %251 = vst [vmem:[#allocation7] sm:$0xff] %v174
    %252 = vst [vmem:[#allocation7 + $0x8] sm:$0xff] %v175
    %253 = vst [vmem:[#allocation7 + $0x10] sm:$0xff] %v176
    %254 = vst [vmem:[#allocation7 + $0x18] sm:$0xff] %v177
    %255 = vst [vmem:[#allocation7 + $0x20] sm:$0xff] %v178
    %256 = vst [vmem:[#allocation7 + $0x28] sm:$0xff] %v179
    %257 = vst [vmem:[#allocation7 + $0x30] sm:$0xff] %v180
    %258 = vst [vmem:[#allocation7 + $0x38] sm:$0xff] %v181
    %259 = vst [vmem:[#allocation7 + $0x40] sm:$0xff] %v182
    %260 = vst [vmem:[#allocation7 + $0x48] sm:$0xff] %v183
    %vm261 = vcmask 916480
    %262 = vst.msk [vmem:[#allocation7 + $0x50] sm:$0xff] %vm261, %v184
    %263 = vst [vmem:[#allocation7 + $0x58] sm:$0xff] %v185
    %264 = vst [vmem:[#allocation7 + $0x60] sm:$0xff] %v186
    %265 = vst [vmem:[#allocation7 + $0x68] sm:$0xff] %v187
    %266 = vst [vmem:[#allocation7 + $0x70] sm:$0xff] %v188
    %267 = vst [vmem:[#allocation7 + $0x78] sm:$0xff] %v189
    %268 = vst [vmem:[#allocation7 + $0x80] sm:$0xff] %v190
    %269 = vst [vmem:[#allocation7 + $0x88] sm:$0xff] %v191
    %270 = vst [vmem:[#allocation7 + $0x90] sm:$0xff] %v192
    %271 = vst [vmem:[#allocation7 + $0x98] sm:$0xff] %v193
    %272 = vst [vmem:[#allocation7 + $0xa0] sm:$0xff] %v194
    %273 = vst.msk [vmem:[#allocation7 + $0xa8] sm:$0xff] %vm261, %v195
    %274 = vst [vmem:[#allocation7 + $0xb0] sm:$0xff] %v196
    %275 = vst [vmem:[#allocation7 + $0xb8] sm:$0xff] %v197
    %276 = vst [vmem:[#allocation7 + $0xc0] sm:$0xff] %v198
    %277 = vst [vmem:[#allocation7 + $0xc8] sm:$0xff] %v199
    %278 = vst [vmem:[#allocation7 + $0xd0] sm:$0xff] %v200
    %279 = vst [vmem:[#allocation7 + $0xd8] sm:$0xff] %v201
    %280 = vst [vmem:[#allocation7 + $0xe0] sm:$0xff] %v202
    %281 = vst [vmem:[#allocation7 + $0xe8] sm:$0xff] %v203
    %282 = vst [vmem:[#allocation7 + $0xf0] sm:$0xff] %v204
    %283 = vst [vmem:[#allocation7 + $0xf8] sm:$0xff] %v205
    %284 = vst.msk [vmem:[#allocation7 + $0x100] sm:$0xff] %vm261, %v206
    %285 = vst [vmem:[#allocation7 + $0x108] sm:$0xff] %v207
    %286 = vst [vmem:[#allocation7 + $0x110] sm:$0xff] %v208
    %287 = vst [vmem:[#allocation7 + $0x118] sm:$0xff] %v209
    %288 = vst [vmem:[#allocation7 + $0x120] sm:$0xff] %v210
    %289 = vst [vmem:[#allocation7 + $0x128] sm:$0xff] %v211
    %290 = vst [vmem:[#allocation7 + $0x130] sm:$0xff] %v212
    %291 = vst [vmem:[#allocation7 + $0x138] sm:$0xff] %v213
    %292 = vst [vmem:[#allocation7 + $0x140] sm:$0xff] %v214
    %293 = vst [vmem:[#allocation7 + $0x148] sm:$0xff] %v215
    %294 = vst [vmem:[#allocation7 + $0x150] sm:$0xff] %v216
    %295 = vst.msk [vmem:[#allocation7 + $0x158] sm:$0xff] %vm261, %v217
    %296 = vst [vmem:[#allocation7 + $0x160] sm:$0xff] %v218
    %297 = vst [vmem:[#allocation7 + $0x168] sm:$0xff] %v219
    %298 = vst [vmem:[#allocation7 + $0x170] sm:$0xff] %v220
    %299 = vst [vmem:[#allocation7 + $0x178] sm:$0xff] %v221
    %300 = vst [vmem:[#allocation7 + $0x180] sm:$0xff] %v222
    %301 = vst [vmem:[#allocation7 + $0x188] sm:$0xff] %v223
    %302 = vst [vmem:[#allocation7 + $0x190] sm:$0xff] %v224
    %303 = vst [vmem:[#allocation7 + $0x198] sm:$0xff] %v225
    %304 = vst [vmem:[#allocation7 + $0x1a0] sm:$0xff] %v226
    %305 = vst [vmem:[#allocation7 + $0x1a8] sm:$0xff] %v227
    %306 = vst.msk [vmem:[#allocation7 + $0x1b0] sm:$0xff] %vm261, %v228
    %307 = vst [vmem:[#allocation7 + $0x1b8] sm:$0xff] %v229
    %308 = vst [vmem:[#allocation7 + $0x1c0] sm:$0xff] %v230
    %309 = vst [vmem:[#allocation7 + $0x1c8] sm:$0xff] %v231
    %310 = vst [vmem:[#allocation7 + $0x1d0] sm:$0xff] %v232
    %311 = vst [vmem:[#allocation7 + $0x1d8] sm:$0xff] %v233
    %312 = vst [vmem:[#allocation7 + $0x1e0] sm:$0xff] %v234
    %313 = vst [vmem:[#allocation7 + $0x1e8] sm:$0xff] %v235
    %314 = vst [vmem:[#allocation7 + $0x1f0] sm:$0xff] %v236
    %315 = vst [vmem:[#allocation7 + $0x1f8] sm:$0xff] %v237
    %316 = vst [vmem:[#allocation7 + $0x200] sm:$0xff] %v238
    %317 = vst.msk [vmem:[#allocation7 + $0x208] sm:$0xff] %vm261, %v239
    %318 = vst [vmem:[#allocation7 + $0x210] sm:$0x1] %v240
    %319 = vst [vmem:[#allocation7 + $0x218] sm:$0x1] %v241
    %320 = vst [vmem:[#allocation7 + $0x220] sm:$0x1] %v242
    %321 = vst [vmem:[#allocation7 + $0x228] sm:$0x1] %v243
    %322 = vst [vmem:[#allocation7 + $0x230] sm:$0x1] %v244
    %323 = vst [vmem:[#allocation7 + $0x238] sm:$0x1] %v245
    %324 = vst [vmem:[#allocation7 + $0x240] sm:$0x1] %v246
    %325 = vst [vmem:[#allocation7 + $0x248] sm:$0x1] %v247
    %326 = vst [vmem:[#allocation7 + $0x250] sm:$0x1] %v248
    %327 = vst [vmem:[#allocation7 + $0x258] sm:$0x1] %v249
    %vm328 = vcmask 909312
    %329 = vst.msk [vmem:[#allocation7 + $0x260] sm:$0x1] %vm328, %v250
    // Predicated region
    $region18: #{tpu_custom_call.1} parent=1 // pred_check
      _
    $region19: #{tpu_custom_call.1} parent=1 // pred_check_branch
      %331 = sbr.rel (0) target = $region21
    $region20: #{tpu_custom_call.1} parent=1 // pred_region
      %s333 = ssub.s32 9856, 9856
      %334 = vsyncadd [#allocation4], %s333
      %s335 = sshll.u32 [#allocation7], 4
      %s336 = int_to_ptr.vmem [resolvable:$true] %s335
      %341 = dma.vmem_to_hbm [thread:$0]  %s336, 9856, %s2, [#allocation4], 1408, 1408, 88
    $region21: #{tpu_custom_call.1} parent=1 // pred_fallthru
      _
    // Predicated region
    $region22: #{tpu_custom_call.1} parent=1 // pred_check
      _
    $region23: #{tpu_custom_call.1} parent=1 // pred_check_branch
      %343 = sbr.rel (0) target = $region25
    $region24: #{tpu_custom_call.1} parent=1 // pred_region
      %344 = dma.done [#allocation4], 9856
    $region25: #{tpu_custom_call.1} parent=1 // pred_fallthru
      _
    %345 = vsyncpa [#allocation3], 1
    %346 = vsyncpa [#allocation6], 1
    %347 = vsyncpa [#allocation4], 1

</llo_original>
